<compile_context>
chip_gen: v7x
topology: tpu7x:2x2x1
jax: 0.10.0
libtpu: 0.0.40
codegen_flags: <defaults>
</compile_context>

<pallas_src>
import jax
import jax.numpy as jnp
from jax.experimental import pallas as pl
from jax.experimental.pallas import tpu as pltpu

_NEG_BIG = -1e30      # pad-lane bias (f32): exp(_NEG_BIG - max) underflows to 0.0
_LANE = 128
_SUBLANE = 8
_TILE_B_CAP = 4096    # rows per batch tile; per-tile VMEM stays a few MiB


def actor_kernel(obs_ref, w1_ref, b1_ref, w2_ref, b2_ref, w3_ref, b3_ref, out_ref):
    """Fused MLP + softmax on one (tile_b, obs_dim) batch tile.

    Weights may be bf16 (MXU operands); accumulation, bias-add, ReLU and the
    softmax are f32.  w3/b3 are lane-padded to a multiple of 128 so the softmax
    reductions are full-lane; only the first action_dim lanes are stored.
    """
    cdt = w1_ref.dtype                      # MXU operand dtype (f32 or bf16)
    x = obs_ref[...].astype(cdt)            # in-kernel cast; obs stays f32 in HBM

    # Layer 1: Linear + ReLU
    h1 = jnp.dot(x, w1_ref[...], preferred_element_type=jnp.float32) + b1_ref[...]
    h1 = jnp.maximum(h1, 0.0)

    # Layer 2: Linear + ReLU
    h2 = jnp.dot(h1.astype(cdt), w2_ref[...],
                 preferred_element_type=jnp.float32) + b2_ref[...]
    h2 = jnp.maximum(h2, 0.0)

    # Layer 3: Linear -> lane-padded logits (tile_b, act_pad); pad lanes ~ -1e30
    logits = jnp.dot(h2.astype(cdt), w3_ref[...],
                     preferred_element_type=jnp.float32) + b3_ref[...]

    # Numerically stable softmax over the full (lane-dense) padded width.
    m = jnp.max(logits, axis=-1, keepdims=True)
    e = jnp.exp(logits - m)                 # padded lanes -> exactly 0.0
    denom = jnp.sum(e, axis=-1, keepdims=True)
    probs = e / denom                       # exact normalization (sums to 1)

    act = out_ref.shape[-1]                 # real action_dim (narrow store)
    out_ref[...] = probs[:, :act].astype(out_ref.dtype)


def _round_up(x, m):
    return (x + m - 1) // m * m


def _pick_tile_b(b_pad, cap=_TILE_B_CAP):
    """Largest multiple-of-8 divisor of b_pad that is <= cap."""
    t = min(b_pad, cap)
    t -= t % _SUBLANE
    while t >= _SUBLANE:
        if b_pad % t == 0:
            return t
        t -= _SUBLANE
    return b_pad


def prepare_actor_params(params, mxu_dtype=jnp.bfloat16):
    """One-time prep: pad w3/b3 lanes to a multiple of 128, cast MXU operands.

    Done once (not per forward call) so the tiny pad/cast ops don't add launch
    latency.  Biases stay f32 (the -1e30 pad would become -inf in bf16).
    """
    action_dim = params["w3"].shape[1]
    act_pad = _round_up(max(action_dim, _LANE), _LANE)
    w3, b3 = params["w3"], params["b3"]
    if act_pad != action_dim:
        w3 = jnp.pad(w3, ((0, 0), (0, act_pad - action_dim)))
        b3 = jnp.pad(b3, ((0, 0), (0, act_pad - action_dim)),
                     constant_values=_NEG_BIG)
    return {
        "w1": params["w1"].astype(mxu_dtype),
        "b1": params["b1"].astype(jnp.float32),
        "w2": params["w2"].astype(mxu_dtype),
        "b2": params["b2"].astype(jnp.float32),
        "w3": w3.astype(mxu_dtype),
        "b3": b3.astype(jnp.float32),
        "action_dim": action_dim,
    }


def actor_forward(obs, prepped, *, tile_b=None, out_dtype=jnp.float32):
    """Actor forward pass.

    obs:     (B, obs_dim) float32.
    prepped: output of prepare_actor_params().
    Returns  (B, action_dim) softmax probabilities (out_dtype, default f32).
    """
    B, obs_dim = obs.shape
    hidden = prepped["w1"].shape[1]
    act_pad = prepped["w3"].shape[1]
    action_dim = prepped["action_dim"]

    # Pad batch to a multiple of 8 (sublane tiling); slice the result back below.
    b_pad = _round_up(B, _SUBLANE)
    obs_p = obs if b_pad == B else jnp.pad(obs, ((0, b_pad - B), (0, 0)))

    if tile_b is None:
        tile_b = _pick_tile_b(b_pad)
    assert b_pad % tile_b == 0 and tile_b % _SUBLANE == 0, \
        "tile_b must be a multiple of 8 dividing the padded batch"
    grid = (b_pad // tile_b,)

    const2d = lambda i: (0, 0)   # weights/biases: same block every grid step

    out = pl.pallas_call(
        actor_kernel,
        out_shape=jax.ShapeDtypeStruct((b_pad, action_dim), out_dtype),
        grid_spec=pltpu.PrefetchScalarGridSpec(
            num_scalar_prefetch=0,
            grid=grid,
            in_specs=[
                pl.BlockSpec((tile_b, obs_dim), lambda i: (i, 0)),   # obs tile
                pl.BlockSpec((obs_dim, hidden), const2d),            # w1
                pl.BlockSpec((1, hidden), const2d),                  # b1
                pl.BlockSpec((hidden, hidden), const2d),             # w2
                pl.BlockSpec((1, hidden), const2d),                  # b2
                pl.BlockSpec((hidden, act_pad), const2d),            # w3 (padded)
                pl.BlockSpec((1, act_pad), const2d),                 # b3 (padded)
            ],
            out_specs=pl.BlockSpec((tile_b, action_dim), lambda i: (i, 0)),
        ),
        compiler_params=pltpu.CompilerParams(
            dimension_semantics=("parallel",),
        ),
    )(obs_p, prepped["w1"], prepped["b1"], prepped["w2"], prepped["b2"],
      prepped["w3"], prepped["b3"])

    return out if b_pad == B else out[:B]


def init_actor_params(key, obs_dim, action_dim, hidden=64):
    """Deterministic synthetic init (PyTorch-like uniform fan-in scaling)."""
    ks = jax.random.split(key, 6)

    def lin(kw, kb, fan_in, fan_out):
        bound = 1.0 / jnp.sqrt(fan_in)
        w = jax.random.uniform(kw, (fan_in, fan_out), jnp.float32, -bound, bound)
        b = jax.random.uniform(kb, (1, fan_out), jnp.float32, -bound, bound)
        return w, b

    w1, b1 = lin(ks[0], ks[1], obs_dim, hidden)
    w2, b2 = lin(ks[2], ks[3], hidden, hidden)
    w3, b3 = lin(ks[4], ks[5], hidden, action_dim)
    return {"w1": w1, "b1": b1, "w2": w2, "b2": b2, "w3": w3, "b3": b3}


def actor_reference(obs, p):
    h1 = jnp.maximum(obs @ p["w1"] + p["b1"], 0.0)
    h2 = jnp.maximum(h1 @ p["w2"] + p["b2"], 0.0)
    logits = h2 @ p["w3"] + p["b3"]
    return jax.nn.softmax(logits, axis=-1)


if __name__ == "__main__":
    key = jax.random.PRNGKey(0)
    k_obs, k_par = jax.random.split(key)

    B, obs_dim, action_dim = 16, 32, 8
    obs = jax.random.normal(k_obs, (B, obs_dim), dtype=jnp.float32)
    params = init_actor_params(k_par, obs_dim, action_dim)
    ref = actor_reference(obs, params)

    # --- exact f32 MXU path, explicit tile_b=8 -> 2-step "parallel" grid -------
    prep_f32 = prepare_actor_params(params, mxu_dtype=jnp.float32)
    out = jax.block_until_ready(actor_forward(obs, prep_f32, tile_b=8))
    assert out.shape == (B, action_dim)
    assert bool(jnp.allclose(jnp.sum(out, axis=-1), 1.0, atol=1e-3))
    assert bool(jnp.allclose(out, ref, atol=2e-3, rtol=2e-3))

    # --- ragged batch (B not a multiple of 8): padded host-side, sliced back ---
    obs5 = obs[:5]
    out5 = jax.block_until_ready(actor_forward(obs5, prep_f32))
    assert out5.shape == (5, action_dim)
    assert bool(jnp.allclose(out5, actor_reference(obs5, params),
                             atol=2e-3, rtol=2e-3))

    # --- bf16 MXU-operand path (default prep), auto tile selection -------------
    prep_bf16 = prepare_actor_params(params)  # mxu_dtype=bf16
    out_bf16 = jax.block_until_ready(actor_forward(obs, prep_bf16))
    assert out_bf16.shape == (B, action_dim)
    assert bool(jnp.all(jnp.isfinite(out_bf16)))
    assert bool(jnp.allclose(jnp.sum(out_bf16, axis=-1), 1.0, atol=1e-2))

    print("KERNEL_OK")
</pallas_src>

<mosaic_0001>
module attributes {stable_mosaic.version = 11 : i64} {
  func.func @actor_kernel(%arg0: i32, %arg1: memref<8x32xf32, #tpu.memory_space<vmem>>, %arg2: memref<32x64xf32, #tpu.memory_space<vmem>>, %arg3: memref<1x64xf32, #tpu.memory_space<vmem>>, %arg4: memref<64x64xf32, #tpu.memory_space<vmem>>, %arg5: memref<1x64xf32, #tpu.memory_space<vmem>>, %arg6: memref<64x128xf32, #tpu.memory_space<vmem>>, %arg7: memref<1x128xf32, #tpu.memory_space<vmem>>, %arg8: memref<8x8xf32, #tpu.memory_space<vmem>>) attributes {dimension_semantics = [#tpu.dimension_semantics<parallel>], iteration_bounds = array<i64: 2>, scalar_prefetch = 0 : i64, scratch_operands = 0 : i64, tpu.core_type = #tpu.core_type<tc>, window_params = [{transform_indices = @transform_0, window_bounds = array<i64: 8, 32>}, {pipeline_mode = #tpu.pipeline_mode<synchronous>, transform_indices = @transform_1, window_bounds = array<i64: 32, 64>}, {pipeline_mode = #tpu.pipeline_mode<synchronous>, transform_indices = @transform_2, window_bounds = array<i64: 1, 64>}, {pipeline_mode = #tpu.pipeline_mode<synchronous>, transform_indices = @transform_3, window_bounds = array<i64: 64, 64>}, {pipeline_mode = #tpu.pipeline_mode<synchronous>, transform_indices = @transform_4, window_bounds = array<i64: 1, 64>}, {pipeline_mode = #tpu.pipeline_mode<synchronous>, transform_indices = @transform_5, window_bounds = array<i64: 64, 128>}, {pipeline_mode = #tpu.pipeline_mode<synchronous>, transform_indices = @transform_6, window_bounds = array<i64: 1, 128>}, {transform_indices = @transform_7, window_bounds = array<i64: 8, 8>}]} {
    %c0 = arith.constant 0 : index
    %c0_0 = arith.constant 0 : index
    %0 = vector.load %arg1[%c0, %c0_0] : memref<8x32xf32, #tpu.memory_space<vmem>>, vector<8x32xf32>
    %c0_1 = arith.constant 0 : index
    %c0_2 = arith.constant 0 : index
    %1 = vector.load %arg2[%c0_1, %c0_2] : memref<32x64xf32, #tpu.memory_space<vmem>>, vector<32x64xf32>
    %cst = arith.constant dense<0.000000e+00> : vector<8x64xf32>
    %2 = tpu.matmul %0, %1, %cst {dimension_numbers = #tpu.dot_dimension_numbers<[1], [0], [0], [1], [0, 0, 1, 1], [], []>} : vector<8x32xf32>, vector<32x64xf32>, vector<8x64xf32> -> vector<8x64xf32>
    %c0_3 = arith.constant 0 : index
    %c0_4 = arith.constant 0 : index
    %3 = vector.load %arg3[%c0_3, %c0_4] : memref<1x64xf32, #tpu.memory_space<vmem>>, vector<1x64xf32>
    %4 = vector.broadcast %3 : vector<1x64xf32> to vector<8x64xf32>
    %5 = arith.addf %2, %4 : vector<8x64xf32>
    %cst_5 = arith.constant 0.000000e+00 : f32
    %6 = vector.broadcast %cst_5 : f32 to vector<8x64xf32>
    %7 = arith.maximumf %5, %6 : vector<8x64xf32>
    %c0_6 = arith.constant 0 : index
    %c0_7 = arith.constant 0 : index
    %8 = vector.load %arg4[%c0_6, %c0_7] : memref<64x64xf32, #tpu.memory_space<vmem>>, vector<64x64xf32>
    %cst_8 = arith.constant dense<0.000000e+00> : vector<8x64xf32>
    %9 = tpu.matmul %7, %8, %cst_8 {dimension_numbers = #tpu.dot_dimension_numbers<[1], [0], [0], [1], [0, 0, 1, 1], [], []>} : vector<8x64xf32>, vector<64x64xf32>, vector<8x64xf32> -> vector<8x64xf32>
    %c0_9 = arith.constant 0 : index
    %c0_10 = arith.constant 0 : index
    %10 = vector.load %arg5[%c0_9, %c0_10] : memref<1x64xf32, #tpu.memory_space<vmem>>, vector<1x64xf32>
    %11 = vector.broadcast %10 : vector<1x64xf32> to vector<8x64xf32>
    %12 = arith.addf %9, %11 : vector<8x64xf32>
    %cst_11 = arith.constant 0.000000e+00 : f32
    %13 = vector.broadcast %cst_11 : f32 to vector<8x64xf32>
    %14 = arith.maximumf %12, %13 : vector<8x64xf32>
    %c0_12 = arith.constant 0 : index
    %c0_13 = arith.constant 0 : index
    %15 = vector.load %arg6[%c0_12, %c0_13] : memref<64x128xf32, #tpu.memory_space<vmem>>, vector<64x128xf32>
    %cst_14 = arith.constant dense<0.000000e+00> : vector<8x128xf32>
    %16 = tpu.matmul %14, %15, %cst_14 {dimension_numbers = #tpu.dot_dimension_numbers<[1], [0], [0], [1], [0, 0, 1, 1], [], []>} : vector<8x64xf32>, vector<64x128xf32>, vector<8x128xf32> -> vector<8x128xf32>
    %c0_15 = arith.constant 0 : index
    %c0_16 = arith.constant 0 : index
    %17 = vector.load %arg7[%c0_15, %c0_16] : memref<1x128xf32, #tpu.memory_space<vmem>>, vector<1x128xf32>
    %18 = vector.broadcast %17 : vector<1x128xf32> to vector<8x128xf32>
    %19 = arith.addf %16, %18 : vector<8x128xf32>
    %cst_17 = arith.constant dense<0xFF800000> : vector<8xf32>
    %20 = vector.multi_reduction <maximumf>, %19, %cst_17 [1] : vector<8x128xf32> to vector<8xf32>
    %21 = vector.shape_cast %20 : vector<8xf32> to vector<8x1xf32>
    %22 = vector.broadcast %21 : vector<8x1xf32> to vector<8x128xf32>
    %23 = arith.subf %19, %22 : vector<8x128xf32>
    %24 = math.exp %23 : vector<8x128xf32>
    %cst_18 = arith.constant dense<0.000000e+00> : vector<8xf32>
    %25 = vector.multi_reduction <add>, %24, %cst_18 [1] : vector<8x128xf32> to vector<8xf32>
    %26 = vector.shape_cast %25 : vector<8xf32> to vector<8x1xf32>
    %27 = vector.broadcast %26 : vector<8x1xf32> to vector<8x128xf32>
    %28 = arith.divf %24, %27 : vector<8x128xf32>
    %29 = vector.extract_strided_slice %28 {offsets = [0, 0], sizes = [8, 8], strides = [1, 1]} : vector<8x128xf32> to vector<8x8xf32>
    %c0_19 = arith.constant 0 : index
    %c0_20 = arith.constant 0 : index
    %30 = vector.load %arg8[%c0_19, %c0_20] : memref<8x8xf32, #tpu.memory_space<vmem>>, vector<8x8xf32>
    tpu.vector_store %arg8[%c0_19, %c0_20], %29 {strides = array<i32>} : memref<8x8xf32, #tpu.memory_space<vmem>>, vector<8x8xf32>,
    return
  }
  func.func @transform_0(%arg0: i32) -> (i32, i32) {
    %c0_i32 = arith.constant 0 : i32
    %c0_i32_0 = arith.constant 0 : i32
    return %arg0, %c0_i32 : i32, i32
  }
  func.func @transform_1(%arg0: i32) -> (i32, i32) {
    %c0_i32 = arith.constant 0 : i32
    %c0_i32_0 = arith.constant 0 : i32
    %c0_i32_1 = arith.constant 0 : i32
    return %c0_i32, %c0_i32_0 : i32, i32
  }
  func.func @transform_2(%arg0: i32) -> (i32, i32) {
    %c0_i32 = arith.constant 0 : i32
    %c0_i32_0 = arith.constant 0 : i32
    %c0_i32_1 = arith.constant 0 : i32
    return %c0_i32, %c0_i32_0 : i32, i32
  }
  func.func @transform_3(%arg0: i32) -> (i32, i32) {
    %c0_i32 = arith.constant 0 : i32
    %c0_i32_0 = arith.constant 0 : i32
    %c0_i32_1 = arith.constant 0 : i32
    return %c0_i32, %c0_i32_0 : i32, i32
  }
  func.func @transform_4(%arg0: i32) -> (i32, i32) {
    %c0_i32 = arith.constant 0 : i32
    %c0_i32_0 = arith.constant 0 : i32
    %c0_i32_1 = arith.constant 0 : i32
    return %c0_i32, %c0_i32_0 : i32, i32
  }
  func.func @transform_5(%arg0: i32) -> (i32, i32) {
    %c0_i32 = arith.constant 0 : i32
    %c0_i32_0 = arith.constant 0 : i32
    %c0_i32_1 = arith.constant 0 : i32
    return %c0_i32, %c0_i32_0 : i32, i32
  }
  func.func @transform_6(%arg0: i32) -> (i32, i32) {
    %c0_i32 = arith.constant 0 : i32
    %c0_i32_0 = arith.constant 0 : i32
    %c0_i32_1 = arith.constant 0 : i32
    return %c0_i32, %c0_i32_0 : i32, i32
  }
  func.func @transform_7(%arg0: i32) -> (i32, i32) {
    %c0_i32 = arith.constant 0 : i32
    %c0_i32_0 = arith.constant 0 : i32
    return %arg0, %c0_i32 : i32, i32
  }
}

</mosaic_0001>

<llo_original>
// kernel: tpu_custom_call.1
$region0: #{tpu_custom_call.1}
  #allocation0 [shape = 'u32[]', space=smem, size = 0x4, offset = 0x4, fixed_abs, tag = 'smem constant byte address 0x4 - core index']
  #allocation1 [shape = 'u32[144,128]{1,0:T(1,128)}', space=vmem, size = 0x12000, scoped, tag = 'internal scratch']
  %s0 = inlined_call_operand.hbm [shape: f32[16,32], index: 0, kind: input, shape index: {}]
  %s1 = inlined_call_operand.hbm [shape: f32[32,64], index: 1, kind: input, shape index: {}]
  %s2 = inlined_call_operand.vmem [shape: f32[1,64], index: 2, kind: input, shape index: {}]
  %s3 = inlined_call_operand.hbm [shape: f32[64,64], index: 3, kind: input, shape index: {}]
  %s4 = inlined_call_operand.vmem [shape: f32[1,64], index: 4, kind: input, shape index: {}]
  %s5 = inlined_call_operand.hbm [shape: f32[64,128], index: 5, kind: input, shape index: {}]
  %s6 = inlined_call_operand.vmem [shape: f32[1,128], index: 6, kind: input, shape index: {}]
  %s7 = inlined_call_operand.vmem [shape: f32[16,8], index: 7, kind: output, shape index: {}]
  %s8 = sld [smem:[#allocation0]]
  $region77: #{tpu_custom_call.1} parent=0
    _
  %s10 = ssub.s32 1, %s8
  %s11 = scalar_select 0, %s10, %s8
  $region1: #{tpu_custom_call.1} parent=0
    #allocation2 [shape = 'u8[8192]{0}', space=vmem, size = 0x2000, scoped, tag = 'input window, operand 0']
    #allocation3 [shape = 's32[2]{0}', space=sflag, size = 0x8, scoped, tag = 'scoped memory for tpu_custom_call.1']
    #allocation4 [shape = 'u8[16384]{0}', space=vmem, size = 0x4000, scoped, tag = 'input window, operand 1, single buffered']
    #allocation5 [shape = 's32[1]{0}', space=sflag, size = 0x4, scoped, tag = 'scoped memory for tpu_custom_call.1']
    #allocation6 [shape = 'u8[32768]{0}', space=vmem, size = 0x8000, scoped, tag = 'input window, operand 3, single buffered']
    #allocation7 [shape = 'u8[32768]{0}', space=vmem, size = 0x8000, scoped, tag = 'input window, operand 5, single buffered']
    #allocation8 [shape = 's32[1]{0}', space=sflag, size = 0x4, scoped, tag = 'scoped memory for tpu_custom_call.1']
    %12 = vsyncpa [#allocation3], 0
    %s13 = scalar_lea.sflag [#allocation3], 1
    %14 = vsyncpa %s13, 0
    %15 = vsyncpa [#allocation5], 0
    %16 = vsyncpa [#allocation8], 0
    loop: start=0, step=1, limit=4
    $region2: #{tpu_custom_call.1} parent=1 // loop_pre_header
      _
    $region3: #{tpu_custom_call.1} parent=1 // loop_header
      %s18 = sphi 0, %s22
      %p19 = scmp.ge.s32.totalorder %s18, 4
      %s28 = sphi 0, %s30
      %s31 = sphi 0, %s28
      %s32 = sphi 0, %s31
      %s48 = sphi 0, %s32
      %s52 = sphi 0, %s52
      %s54 = sphi 0, %s52
      %s55 = sphi 0, %s54
      %s69 = sphi 0, %s55
      %s73 = sphi 0, %s73
      %s75 = sphi 0, %s73
      %s76 = sphi 0, %s75
      %s90 = sphi 0, %s76
      %s94 = sphi 0, %s94
      %s96 = sphi 0, %s94
      %s97 = sphi 0, %s96
      %s111 = sphi 0, %s97
      %s115 = sphi 0, %s115
      %s117 = sphi 0, %s115
      %s118 = sphi 0, %s117
      %s132 = sphi 0, %s118
      %s136 = sphi 0, %s136
      %s138 = sphi 0, %s136
      %s139 = sphi 0, %s138
      %s153 = sphi 0, %s139
      %s157 = sphi 0, %s157
      %s159 = sphi 0, %s157
      %s160 = sphi 0, %s159
      %s174 = sphi 0, %s160
      %s180 = sphi 0, %s182
      %s183 = sphi 0, %s180
      %s184 = sphi 0, %s183
      %s200 = sphi 0, %s184
    $region4: #{tpu_custom_call.1} parent=1 // loop_header_branch
      %21 = sbr.rel (%p19) target = $region8
    $region5: #{tpu_custom_call.1} parent=1 // loop_body
      %s23 = ssub.s32 %s18, 1
      %s24 = ssub.s32 %s18, 2
      %s25 = sadd.s32 %s18, 1
      %s26 = ssub.s32 %s18, %s25
      %p27 = scmp.eq.s32.totalorder %s26, 0
      %s29 = sadd.s32 %s28, 1
      %s30 = scalar_select %p27, %s28, %s29
      %p33 = pneg %p27
      %p34 = scmp.eq.s32.totalorder %s18, 1
      %p35 = por %p33, %p34
      %p36 = scmp.ne.s32.totalorder %s28, %s31
      %p37 = scmp.eq.s32.totalorder %s18, 0
      %p38 = por %p36, %p37
      %p39 = scmp.ne.s32.totalorder %s28, %s31
      %p40 = scmp.eq.s32.totalorder %s23, 1
      %p41 = por %p39, %p40
      %p42 = scmp.ne.s32.totalorder %s31, %s32
      %p43 = scmp.eq.s32.totalorder %s23, 0
      %p44 = por %p42, %p43
      %p45 = scmp.ne.s32.totalorder %s31, %s32
      %p46 = scmp.eq.s32.totalorder %s24, 1
      %p47 = por %p45, %p46
      %p49 = scmp.ne.s32.totalorder %s32, %s48
      %p50 = scmp.eq.s32.totalorder %s24, 0
      %p51 = por %p49, %p50
      %s53 = sadd.s32 %s52, 1
      %p56 = scmp.eq.s32.totalorder %s18, 1
      %p57 = scmp.ne.s32.totalorder %s52, %s54
      %p58 = scmp.eq.s32.totalorder %s18, 0
      %p59 = por %p57, %p58
      %p60 = scmp.ne.s32.totalorder %s52, %s54
      %p61 = scmp.eq.s32.totalorder %s23, 1
      %p62 = por %p60, %p61
      %p63 = scmp.ne.s32.totalorder %s54, %s55
      %p64 = scmp.eq.s32.totalorder %s23, 0
      %p65 = por %p63, %p64
      %p66 = scmp.ne.s32.totalorder %s54, %s55
      %p67 = scmp.eq.s32.totalorder %s24, 1
      %p68 = por %p66, %p67
      %p70 = scmp.ne.s32.totalorder %s55, %s69
      %p71 = scmp.eq.s32.totalorder %s24, 0
      %p72 = por %p70, %p71
      %s74 = sadd.s32 %s73, 1
      %p77 = scmp.eq.s32.totalorder %s18, 1
      %p78 = scmp.ne.s32.totalorder %s73, %s75
      %p79 = scmp.eq.s32.totalorder %s18, 0
      %p80 = por %p78, %p79
      %p81 = scmp.ne.s32.totalorder %s73, %s75
      %p82 = scmp.eq.s32.totalorder %s23, 1
      %p83 = por %p81, %p82
      %p84 = scmp.ne.s32.totalorder %s75, %s76
      %p85 = scmp.eq.s32.totalorder %s23, 0
      %p86 = por %p84, %p85
      %p87 = scmp.ne.s32.totalorder %s75, %s76
      %p88 = scmp.eq.s32.totalorder %s24, 1
      %p89 = por %p87, %p88
      %p91 = scmp.ne.s32.totalorder %s76, %s90
      %p92 = scmp.eq.s32.totalorder %s24, 0
      %p93 = por %p91, %p92
      %s95 = sadd.s32 %s94, 1
      %p98 = scmp.eq.s32.totalorder %s18, 1
      %p99 = scmp.ne.s32.totalorder %s94, %s96
      %p100 = scmp.eq.s32.totalorder %s18, 0
      %p101 = por %p99, %p100
      %p102 = scmp.ne.s32.totalorder %s94, %s96
      %p103 = scmp.eq.s32.totalorder %s23, 1
      %p104 = por %p102, %p103
      %p105 = scmp.ne.s32.totalorder %s96, %s97
      %p106 = scmp.eq.s32.totalorder %s23, 0
      %p107 = por %p105, %p106
      %p108 = scmp.ne.s32.totalorder %s96, %s97
      %p109 = scmp.eq.s32.totalorder %s24, 1
      %p110 = por %p108, %p109
      %p112 = scmp.ne.s32.totalorder %s97, %s111
      %p113 = scmp.eq.s32.totalorder %s24, 0
      %p114 = por %p112, %p113
      %s116 = sadd.s32 %s115, 1
      %p119 = scmp.eq.s32.totalorder %s18, 1
      %p120 = scmp.ne.s32.totalorder %s115, %s117
      %p121 = scmp.eq.s32.totalorder %s18, 0
      %p122 = por %p120, %p121
      %p123 = scmp.ne.s32.totalorder %s115, %s117
      %p124 = scmp.eq.s32.totalorder %s23, 1
      %p125 = por %p123, %p124
      %p126 = scmp.ne.s32.totalorder %s117, %s118
      %p127 = scmp.eq.s32.totalorder %s23, 0
      %p128 = por %p126, %p127
      %p129 = scmp.ne.s32.totalorder %s117, %s118
      %p130 = scmp.eq.s32.totalorder %s24, 1
      %p131 = por %p129, %p130
      %p133 = scmp.ne.s32.totalorder %s118, %s132
      %p134 = scmp.eq.s32.totalorder %s24, 0
      %p135 = por %p133, %p134
      %s137 = sadd.s32 %s136, 1
      %p140 = scmp.eq.s32.totalorder %s18, 1
      %p141 = scmp.ne.s32.totalorder %s136, %s138
      %p142 = scmp.eq.s32.totalorder %s18, 0
      %p143 = por %p141, %p142
      %p144 = scmp.ne.s32.totalorder %s136, %s138
      %p145 = scmp.eq.s32.totalorder %s23, 1
      %p146 = por %p144, %p145
      %p147 = scmp.ne.s32.totalorder %s138, %s139
      %p148 = scmp.eq.s32.totalorder %s23, 0
      %p149 = por %p147, %p148
      %p150 = scmp.ne.s32.totalorder %s138, %s139
      %p151 = scmp.eq.s32.totalorder %s24, 1
      %p152 = por %p150, %p151
      %p154 = scmp.ne.s32.totalorder %s139, %s153
      %p155 = scmp.eq.s32.totalorder %s24, 0
      %p156 = por %p154, %p155
      %s158 = sadd.s32 %s157, 1
      %p161 = scmp.eq.s32.totalorder %s18, 1
      %p162 = scmp.ne.s32.totalorder %s157, %s159
      %p163 = scmp.eq.s32.totalorder %s18, 0
      %p164 = por %p162, %p163
      %p165 = scmp.ne.s32.totalorder %s157, %s159
      %p166 = scmp.eq.s32.totalorder %s23, 1
      %p167 = por %p165, %p166
      %p168 = scmp.ne.s32.totalorder %s159, %s160
      %p169 = scmp.eq.s32.totalorder %s23, 0
      %p170 = por %p168, %p169
      %p171 = scmp.ne.s32.totalorder %s159, %s160
      %p172 = scmp.eq.s32.totalorder %s24, 1
      %p173 = por %p171, %p172
      %p175 = scmp.ne.s32.totalorder %s160, %s174
      %p176 = scmp.eq.s32.totalorder %s24, 0
      %p177 = por %p175, %p176
      %s178 = ssub.s32 %s18, %s25
      %p179 = scmp.eq.s32.totalorder %s178, 0
      %s181 = sadd.s32 %s180, 1
      %s182 = scalar_select %p179, %s180, %s181
      %p185 = pneg %p179
      %p186 = scmp.eq.s32.totalorder %s18, 1
      %p187 = por %p185, %p186
      %p188 = scmp.ne.s32.totalorder %s180, %s183
      %p189 = scmp.eq.s32.totalorder %s18, 0
      %p190 = por %p188, %p189
      %p191 = scmp.ne.s32.totalorder %s180, %s183
      %p192 = scmp.eq.s32.totalorder %s23, 1
      %p193 = por %p191, %p192
      %p194 = scmp.ne.s32.totalorder %s183, %s184
      %p195 = scmp.eq.s32.totalorder %s23, 0
      %p196 = por %p194, %p195
      %p197 = scmp.ne.s32.totalorder %s183, %s184
      %p198 = scmp.eq.s32.totalorder %s24, 1
      %p199 = por %p197, %p198
      %p201 = scmp.ne.s32.totalorder %s184, %s200
      %p202 = scmp.eq.s32.totalorder %s24, 0
      %p203 = por %p201, %p202
      %p204 = scmp.le.s32.totalorder 1, %s18
      %p205 = scmp.lt.s32.totalorder %s18, 3
      %p206 = pnand %p204, %p205
      %p207 = pneg %p206
      // Predicated region
      $region9: #{tpu_custom_call.1} parent=5 // pred_check
        _
      $region10: #{tpu_custom_call.1} parent=5 // pred_check_branch
        %209 = sbr.rel (%p206) target = $region12
      $region11: #{tpu_custom_call.1} parent=5 // pred_region
        %s210 = ssub.s32 %s18, 1
        // Predicated region
        $region13: #{tpu_custom_call.1} parent=11 // pred_check
          %p211 = pneg %p65
        $region14: #{tpu_custom_call.1} parent=11 // pred_check_branch
          %213 = sbr.rel (%p211) target = $region16
        $region15: #{tpu_custom_call.1} parent=11 // pred_region
          %s215 = ssub.s32 512, 512
          %216 = vsyncadd [#allocation5], %s215
          %s217 = sshll.u32 [#allocation4], 4
          %s218 = int_to_ptr.vmem [resolvable:$true] %s217
          %223 = dma.hbm_to_vmem [thread:$0]  %s1, 512, %s218, [#allocation5], 128, 128, 8
        $region16: #{tpu_custom_call.1} parent=11 // pred_fallthru
          _
        // Predicated region
        $region17: #{tpu_custom_call.1} parent=11 // pred_check
          %p224 = pneg %p86
        $region18: #{tpu_custom_call.1} parent=11 // pred_check_branch
          %226 = sbr.rel (%p224) target = $region20
        $region19: #{tpu_custom_call.1} parent=11 // pred_region
          _
        $region20: #{tpu_custom_call.1} parent=11 // pred_fallthru
          _
        // Predicated region
        $region21: #{tpu_custom_call.1} parent=11 // pred_check
          %p227 = pneg %p107
        $region22: #{tpu_custom_call.1} parent=11 // pred_check_branch
          %229 = sbr.rel (%p227) target = $region24
        $region23: #{tpu_custom_call.1} parent=11 // pred_region
          %s231 = ssub.s32 1024, 1024
          %232 = vsyncadd [#allocation5], %s231
          %s233 = sshll.u32 [#allocation6], 4
          %s234 = int_to_ptr.vmem [resolvable:$true] %s233
          %239 = dma.hbm_to_vmem [thread:$0]  %s3, 1024, %s234, [#allocation5], 128, 128, 8
        $region24: #{tpu_custom_call.1} parent=11 // pred_fallthru
          _
        // Predicated region
        $region25: #{tpu_custom_call.1} parent=11 // pred_check
          %p240 = pneg %p128
        $region26: #{tpu_custom_call.1} parent=11 // pred_check_branch
          %242 = sbr.rel (%p240) target = $region28
        $region27: #{tpu_custom_call.1} parent=11 // pred_region
          _
        $region28: #{tpu_custom_call.1} parent=11 // pred_fallthru
          _
        // Predicated region
        $region29: #{tpu_custom_call.1} parent=11 // pred_check
          %p243 = pneg %p149
        $region30: #{tpu_custom_call.1} parent=11 // pred_check_branch
          %245 = sbr.rel (%p243) target = $region32
        $region31: #{tpu_custom_call.1} parent=11 // pred_region
          %s247 = ssub.s32 1024, 1024
          %248 = vsyncadd [#allocation8], %s247
          %s249 = sshll.u32 [#allocation7], 4
          %s250 = int_to_ptr.vmem [resolvable:$true] %s249
          %255 = dma.hbm_to_vmem [thread:$0]  %s5, 1024, %s250, [#allocation8], 128, 128, 8
        $region32: #{tpu_custom_call.1} parent=11 // pred_fallthru
          _
        // Predicated region
        $region33: #{tpu_custom_call.1} parent=11 // pred_check
          %p256 = pneg %p170
        $region34: #{tpu_custom_call.1} parent=11 // pred_check_branch
          %258 = sbr.rel (%p256) target = $region36
        $region35: #{tpu_custom_call.1} parent=11 // pred_region
          _
        $region36: #{tpu_custom_call.1} parent=11 // pred_fallthru
          _
      $region12: #{tpu_custom_call.1} parent=5 // pred_fallthru
        _
      %p259 = scmp.lt.s32.totalorder %s18, 2
      // Predicated region
      $region37: #{tpu_custom_call.1} parent=5 // pred_check
        %p260 = pneg %p259
      $region38: #{tpu_custom_call.1} parent=5 // pred_check_branch
        %262 = sbr.rel (%p260) target = $region40
      $region39: #{tpu_custom_call.1} parent=5 // pred_region
        // Predicated region
        $region41: #{tpu_custom_call.1} parent=39 // pred_check
          %p263 = pneg %p38
        $region42: #{tpu_custom_call.1} parent=39 // pred_check_branch
          %265 = sbr.rel (%p263) target = $region44
        $region43: #{tpu_custom_call.1} parent=39 // pred_region
          %s266 = sand.u32 %s28, 1
          %s267 = scalar_lea.sflag [#allocation3], %s266
          %s268 = sand.u32 %s28, 1
          %s269 = smul.addr %s268, 8
          %s270 = scalar_lea.vmem [#allocation2], %s269
          %s272 = ssub.s32 128, 128
          %273 = vsyncadd %s267, %s272
          %s274 = smul.addr %s18, 128
          %s275 = scalar_lea.hbm %s0, %s274
          %s277 = sshll.u32 %s270, 4
          %s278 = int_to_ptr.vmem [resolvable:$true] %s277
          %280 = dma.hbm_to_vmem [thread:$0]  %s275, 128, %s278, %s267
        $region44: #{tpu_custom_call.1} parent=39 // pred_fallthru
          _
      $region40: #{tpu_custom_call.1} parent=5 // pred_fallthru
        _
      %p281 = scmp.le.s32.totalorder 1, %s18
      %p282 = scmp.lt.s32.totalorder %s18, 3
      %p283 = pnand %p281, %p282
      %p284 = pneg %p283
      // Predicated region
      $region45: #{tpu_custom_call.1} parent=5 // pred_check
        _
      $region46: #{tpu_custom_call.1} parent=5 // pred_check_branch
        %286 = sbr.rel (%p283) target = $region48
      $region47: #{tpu_custom_call.1} parent=5 // pred_region
        %s287 = ssub.s32 %s18, 1
        %s288 = sand.u32 %s31, 1
        %s289 = scalar_lea.sflag [#allocation3], %s288
        %s290 = sand.u32 %s31, 1
        %s291 = smul.addr %s290, 8
        %s292 = scalar_lea.vmem [#allocation2], %s291
        // Predicated region
        $region49: #{tpu_custom_call.1} parent=47 // pred_check
          %p293 = pneg %p44
        $region50: #{tpu_custom_call.1} parent=47 // pred_check_branch
          %295 = sbr.rel (%p293) target = $region52
        $region51: #{tpu_custom_call.1} parent=47 // pred_region
          %296 = dma.done %s289, 128
        $region52: #{tpu_custom_call.1} parent=47 // pred_fallthru
          _
        // Predicated region
        $region53: #{tpu_custom_call.1} parent=47 // pred_check
          %p297 = pneg %p65
        $region54: #{tpu_custom_call.1} parent=47 // pred_check_branch
          %299 = sbr.rel (%p297) target = $region56
        $region55: #{tpu_custom_call.1} parent=47 // pred_region
          %300 = dma.done [#allocation5], 512
        $region56: #{tpu_custom_call.1} parent=47 // pred_fallthru
          _
        // Predicated region
        $region57: #{tpu_custom_call.1} parent=47 // pred_check
          %p301 = pneg %p107
        $region58: #{tpu_custom_call.1} parent=47 // pred_check_branch
          %303 = sbr.rel (%p301) target = $region60
        $region59: #{tpu_custom_call.1} parent=47 // pred_region
          %304 = dma.done [#allocation5], 1024
        $region60: #{tpu_custom_call.1} parent=47 // pred_fallthru
          _
        // Predicated region
        $region61: #{tpu_custom_call.1} parent=47 // pred_check
          %p305 = pneg %p149
        $region62: #{tpu_custom_call.1} parent=47 // pred_check_branch
          %307 = sbr.rel (%p305) target = $region64
        $region63: #{tpu_custom_call.1} parent=47 // pred_region
          %308 = dma.done [#allocation8], 1024
        $region64: #{tpu_custom_call.1} parent=47 // pred_fallthru
          _
        %s309 = sand.u32 %s31, 1
        %s310 = scalar_lea.sflag [#allocation3], %s309
        %s311 = sand.u32 %s31, 1
        %s312 = smul.addr %s311, 8
        %s313 = scalar_lea.vmem [#allocation2], %s312
        %p314 = pneg %p44
        %p315 = pneg %p41
        %p316 = pneg %p65
        %p317 = pneg %p62
        %p318 = pneg %p86
        %p319 = pneg %p83
        %p320 = pneg %p107
        %p321 = pneg %p104
        %p322 = pneg %p128
        %p323 = pneg %p125
        %p324 = pneg %p149
        %p325 = pneg %p146
        %p326 = pneg %p170
        %p327 = pneg %p167
        %p328 = pneg %p196
        %p329 = pneg %p193
        %p330 = scmp.lt.s32.totalorder %s23, 1
        %s331 = scalar_select %p330, %s23, 1
        %s332 = smul.addr %s331, 8
        %s333 = scalar_lea.vmem %s7, %s332
        %p334 = scmp.lt.s32.totalorder %s23, 1
        %s335 = scalar_select %p334, %s23, 1
        %s336 = smul.addr %s335, 8
        %s337 = scalar_lea.vmem %s7, %s336
        %v338 = vld [vmem:[%s292] sm:$0xff]
        %v339 = vld [vmem:[#allocation4] sm:$0xff]
        %v340 = vld [vmem:[#allocation4 + $0x8] sm:$0xff]
        %v341 = vld [vmem:[#allocation4 + $0x10] sm:$0xff]
        %v342 = vld [vmem:[#allocation4 + $0x18] sm:$0xff]
        %v343 = vld [vmem:[%s2] sm:$0x1]
        %v345 = vlaneseq
        %v346 = vshrl.u32 %v345, 7
        %v347 = vsub.s32 0, %v346
        %v348 = vrot.slane %v343, %v347
        %vm350 = vcmask 261120
        %v352 = vsel %vm350, %v338, 0
        %354 = vmatprep.subr.mxu0 0.0
        %355 = vmatpush1.msra.mxu0 %v339
        %356 = vmatprep.subr.mxu0 0.0
        %357 = vmatpush1.msra.mxu0 %v340
        %358 = vmatprep.subr.mxu0 0.0
        %359 = vmatpush1.msra.mxu0 %v341
        %360 = vmatprep.subr.mxu0 0.0
        %361 = vmatpush1.msra.mxu0 %v342
        %362 = vmatprep.subr.mxu0 0.0
        %363 = vmatpush1.msra.mxu0 0.0
        %364 = vmatprep.subr.mxu0 0.0
        %365 = vmatpush1.msra.mxu0 0.0
        %366 = vmatprep.subr.mxu0 0.0
        %367 = vmatpush1.msra.mxu0 0.0
        %368 = vmatprep.subr.mxu0 0.0
        %369 = vmatpush1.msra.mxu0 0.0
        %370 = vmatprep.subr.mxu0 0.0
        %371 = vmatpush1.msra.mxu0 0.0
        %372 = vmatprep.subr.mxu0 0.0
        %373 = vmatpush1.msra.mxu0 0.0
        %374 = vmatprep.subr.mxu0 0.0
        %375 = vmatpush1.msra.mxu0 0.0
        %376 = vmatprep.subr.mxu0 0.0
        %377 = vmatpush1.msra.mxu0 0.0
        %378 = vmatprep.subr.mxu0 0.0
        %379 = vmatpush1.msra.mxu0 0.0
        %380 = vmatprep.subr.mxu0 0.0
        %381 = vmatpush1.msra.mxu0 0.0
        %382 = vmatprep.subr.mxu0 0.0
        %383 = vmatpush1.msra.mxu0 0.0
        %384 = vmatprep.subr.mxu0 0.0
        %385 = vmatpush1.msra.mxu0 0.0
        %386 = vmatprep.subr.mxu0 0.0
        %387 = vmatpush1.msra.mxu0 0.0
        %388 = vmatprep.subr.mxu0 0.0
        %389 = vmatpush1.msra.mxu0 0.0
        %390 = vmatprep.subr.mxu0 0.0
        %391 = vmatpush1.msra.mxu0 0.0
        %392 = vmatprep.subr.mxu0 0.0
        %393 = vmatpush1.msra.mxu0 0.0
        %394 = vmatprep.subr.mxu0 0.0
        %395 = vmatpush1.msra.mxu0 0.0
        %396 = vmatprep.subr.mxu0 0.0
        %397 = vmatpush1.msra.mxu0 0.0
        %398 = vmatprep.subr.mxu0 0.0
        %399 = vmatpush1.msra.mxu0 0.0
        %400 = vmatprep.subr.mxu0 0.0
        %401 = vmatpush1.msra.mxu0 0.0
        %402 = vmatprep.subr.mxu0 0.0
        %403 = vmatpush1.msra.mxu0 0.0
        %404 = vmatprep.subr.mxu0 0.0
        %405 = vmatpush1.msra.mxu0 0.0
        %406 = vmatprep.subr.mxu0 0.0
        %407 = vmatpush1.msra.mxu0 0.0
        %408 = vmatprep.subr.mxu0 0.0
        %409 = vmatpush1.msra.mxu0 0.0
        %410 = vmatprep.subr.mxu0 0.0
        %411 = vmatpush1.msra.mxu0 0.0
        %412 = vmatprep.subr.mxu0 0.0
        %413 = vmatpush1.msra.mxu0 0.0
        %414 = vmatprep.subr.mxu0 0.0
        %415 = vmatpush1.msra.mxu0 0.0
        %416 = vmatprep.subr.mxu0 0.0
        %417 = vmatpush1.msra.mxu0 0.0
        %418 = vmatprep.mubr.f32.mxu0 0.0
        %419 = vmatmul.mubr.f32.gmra.mrb[0].mxu0 %v352
        %v420 = vpop.f32.mrb[0].mxu0
        %v421 = vadd.f32 %v348, %v420
        %v422 = vpop.f32.mrb[0].mxu0
        %423 = vdwg.mxu0
        %v424 = vmax.f32 %v421, 0.0
        %v425 = vld [vmem:[#allocation6] sm:$0xff]
        %v426 = vld [vmem:[#allocation6 + $0x8] sm:$0xff]
        %v427 = vld [vmem:[#allocation6 + $0x10] sm:$0xff]
        %v428 = vld [vmem:[#allocation6 + $0x18] sm:$0xff]
        %v429 = vld [vmem:[#allocation6 + $0x20] sm:$0xff]
        %v430 = vld [vmem:[#allocation6 + $0x28] sm:$0xff]
        %v431 = vld [vmem:[#allocation6 + $0x30] sm:$0xff]
        %v432 = vld [vmem:[#allocation6 + $0x38] sm:$0xff]
        %v433 = vld [vmem:[%s4] sm:$0x1]
        %v435 = vlaneseq
        %v436 = vshrl.u32 %v435, 7
        %v437 = vsub.s32 0, %v436
        %v438 = vrot.slane %v433, %v437
        %vm440 = vcmask 523264
        %v442 = vsel %vm440, %v424, 0
        %444 = vmatprep.subr.mxu0 0.0
        %445 = vmatpush1.msra.mxu0 %v425
        %446 = vmatprep.subr.mxu0 0.0
        %447 = vmatpush1.msra.mxu0 %v426
        %448 = vmatprep.subr.mxu0 0.0
        %449 = vmatpush1.msra.mxu0 %v427
        %450 = vmatprep.subr.mxu0 0.0
        %451 = vmatpush1.msra.mxu0 %v428
        %452 = vmatprep.subr.mxu0 0.0
        %453 = vmatpush1.msra.mxu0 %v429
        %454 = vmatprep.subr.mxu0 0.0
        %455 = vmatpush1.msra.mxu0 %v430
        %456 = vmatprep.subr.mxu0 0.0
        %457 = vmatpush1.msra.mxu0 %v431
        %458 = vmatprep.subr.mxu0 0.0
        %459 = vmatpush1.msra.mxu0 %v432
        %460 = vmatprep.subr.mxu0 0.0
        %461 = vmatpush1.msra.mxu0 0.0
        %462 = vmatprep.subr.mxu0 0.0
        %463 = vmatpush1.msra.mxu0 0.0
        %464 = vmatprep.subr.mxu0 0.0
        %465 = vmatpush1.msra.mxu0 0.0
        %466 = vmatprep.subr.mxu0 0.0
        %467 = vmatpush1.msra.mxu0 0.0
        %468 = vmatprep.subr.mxu0 0.0
        %469 = vmatpush1.msra.mxu0 0.0
        %470 = vmatprep.subr.mxu0 0.0
        %471 = vmatpush1.msra.mxu0 0.0
        %472 = vmatprep.subr.mxu0 0.0
        %473 = vmatpush1.msra.mxu0 0.0
        %474 = vmatprep.subr.mxu0 0.0
        %475 = vmatpush1.msra.mxu0 0.0
        %476 = vmatprep.subr.mxu0 0.0
        %477 = vmatpush1.msra.mxu0 0.0
        %478 = vmatprep.subr.mxu0 0.0
        %479 = vmatpush1.msra.mxu0 0.0
        %480 = vmatprep.subr.mxu0 0.0
        %481 = vmatpush1.msra.mxu0 0.0
        %482 = vmatprep.subr.mxu0 0.0
        %483 = vmatpush1.msra.mxu0 0.0
        %484 = vmatprep.subr.mxu0 0.0
        %485 = vmatpush1.msra.mxu0 0.0
        %486 = vmatprep.subr.mxu0 0.0
        %487 = vmatpush1.msra.mxu0 0.0
        %488 = vmatprep.subr.mxu0 0.0
        %489 = vmatpush1.msra.mxu0 0.0
        %490 = vmatprep.subr.mxu0 0.0
        %491 = vmatpush1.msra.mxu0 0.0
        %492 = vmatprep.subr.mxu0 0.0
        %493 = vmatpush1.msra.mxu0 0.0
        %494 = vmatprep.subr.mxu0 0.0
        %495 = vmatpush1.msra.mxu0 0.0
        %496 = vmatprep.subr.mxu0 0.0
        %497 = vmatpush1.msra.mxu0 0.0
        %498 = vmatprep.subr.mxu0 0.0
        %499 = vmatpush1.msra.mxu0 0.0
        %500 = vmatprep.subr.mxu0 0.0
        %501 = vmatpush1.msra.mxu0 0.0
        %502 = vmatprep.subr.mxu0 0.0
        %503 = vmatpush1.msra.mxu0 0.0
        %504 = vmatprep.subr.mxu0 0.0
        %505 = vmatpush1.msra.mxu0 0.0
        %506 = vmatprep.subr.mxu0 0.0
        %507 = vmatpush1.msra.mxu0 0.0
        %508 = vmatprep.mubr.f32.mxu0 0.0
        %509 = vmatmul.mubr.f32.gmra.mrb[0].mxu0 %v442
        %v510 = vpop.f32.mrb[0].mxu0
        %v511 = vadd.f32 %v438, %v510
        %v512 = vpop.f32.mrb[0].mxu0
        %513 = vdwg.mxu0
        %v514 = vmax.f32 %v511, 0.0
        %v515 = vld [vmem:[#allocation7] sm:$0xff]
        %v516 = vld [vmem:[#allocation7 + $0x8] sm:$0xff]
        %v517 = vld [vmem:[#allocation7 + $0x10] sm:$0xff]
        %v518 = vld [vmem:[#allocation7 + $0x18] sm:$0xff]
        %v519 = vld [vmem:[#allocation7 + $0x20] sm:$0xff]
        %v520 = vld [vmem:[#allocation7 + $0x28] sm:$0xff]
        %v521 = vld [vmem:[#allocation7 + $0x30] sm:$0xff]
        %v522 = vld [vmem:[#allocation7 + $0x38] sm:$0xff]
        %v523 = vld [vmem:[%s6] sm:$0x1]
        %v525 = vlaneseq
        %v526 = vshrl.u32 %v525, 7
        %v527 = vsub.s32 0, %v526
        %v528 = vrot.slane %v523, %v527
        %v531 = vsel %vm440, %v514, 0
        %533 = vmatprep.subr.mxu0 0.0
        %534 = vmatpush1.msra.mxu0 %v515
        %535 = vmatprep.subr.mxu0 0.0
        %536 = vmatpush1.msra.mxu0 %v516
        %537 = vmatprep.subr.mxu0 0.0
        %538 = vmatpush1.msra.mxu0 %v517
        %539 = vmatprep.subr.mxu0 0.0
        %540 = vmatpush1.msra.mxu0 %v518
        %541 = vmatprep.subr.mxu0 0.0
        %542 = vmatpush1.msra.mxu0 %v519
        %543 = vmatprep.subr.mxu0 0.0
        %544 = vmatpush1.msra.mxu0 %v520
        %545 = vmatprep.subr.mxu0 0.0
        %546 = vmatpush1.msra.mxu0 %v521
        %547 = vmatprep.subr.mxu0 0.0
        %548 = vmatpush1.msra.mxu0 %v522
        %549 = vmatprep.subr.mxu0 0.0
        %550 = vmatpush1.msra.mxu0 0.0
        %551 = vmatprep.subr.mxu0 0.0
        %552 = vmatpush1.msra.mxu0 0.0
        %553 = vmatprep.subr.mxu0 0.0
        %554 = vmatpush1.msra.mxu0 0.0
        %555 = vmatprep.subr.mxu0 0.0
        %556 = vmatpush1.msra.mxu0 0.0
        %557 = vmatprep.subr.mxu0 0.0
        %558 = vmatpush1.msra.mxu0 0.0
        %559 = vmatprep.subr.mxu0 0.0
        %560 = vmatpush1.msra.mxu0 0.0
        %561 = vmatprep.subr.mxu0 0.0
        %562 = vmatpush1.msra.mxu0 0.0
        %563 = vmatprep.subr.mxu0 0.0
        %564 = vmatpush1.msra.mxu0 0.0
        %565 = vmatprep.subr.mxu0 0.0
        %566 = vmatpush1.msra.mxu0 0.0
        %567 = vmatprep.subr.mxu0 0.0
        %568 = vmatpush1.msra.mxu0 0.0
        %569 = vmatprep.subr.mxu0 0.0
        %570 = vmatpush1.msra.mxu0 0.0
        %571 = vmatprep.subr.mxu0 0.0
        %572 = vmatpush1.msra.mxu0 0.0
        %573 = vmatprep.subr.mxu0 0.0
        %574 = vmatpush1.msra.mxu0 0.0
        %575 = vmatprep.subr.mxu0 0.0
        %576 = vmatpush1.msra.mxu0 0.0
        %577 = vmatprep.subr.mxu0 0.0
        %578 = vmatpush1.msra.mxu0 0.0
        %579 = vmatprep.subr.mxu0 0.0
        %580 = vmatpush1.msra.mxu0 0.0
        %581 = vmatprep.subr.mxu0 0.0
        %582 = vmatpush1.msra.mxu0 0.0
        %583 = vmatprep.subr.mxu0 0.0
        %584 = vmatpush1.msra.mxu0 0.0
        %585 = vmatprep.subr.mxu0 0.0
        %586 = vmatpush1.msra.mxu0 0.0
        %587 = vmatprep.subr.mxu0 0.0
        %588 = vmatpush1.msra.mxu0 0.0
        %589 = vmatprep.subr.mxu0 0.0
        %590 = vmatpush1.msra.mxu0 0.0
        %591 = vmatprep.subr.mxu0 0.0
        %592 = vmatpush1.msra.mxu0 0.0
        %593 = vmatprep.subr.mxu0 0.0
        %594 = vmatpush1.msra.mxu0 0.0
        %595 = vmatprep.subr.mxu0 0.0
        %596 = vmatpush1.msra.mxu0 0.0
        %597 = vmatprep.mubr.f32.mxu0 0.0
        %598 = vmatmul.mubr.f32.gmra.mrb[0].mxu0 %v531
        %v599 = vpop.f32.mrb[0].mxu0
        %v600 = vadd.f32 %v528, %v599
        %v601 = vpop.f32.mrb[0].mxu0
        %602 = vdwg.mxu0
        %603 = vmax.xlane.f32.xlu0 %v600
        %v604 = vpop.xlane.xlu0 %603
        %v605 = vsub.f32 %v600, %v604
        %v606 = vmul.f32 %v605, 1.442695
        %v607 = vpow.pop %v606
        %608 = vadd.xlane.f32.xlu0 %v607
        %v609 = vpop.xlane.xlu0 %608
        %v610 = vrcp.pop %v609
        %v611 = vmul.f32 %v607, %v610
        %vm612 = vcmask 64512
        %613 = vst.msk [vmem:[%s337] sm:$0xff] %vm612, %v611
        %p614 = scmp.lt.s32.totalorder %s23, 1
        %s615 = scalar_select %p614, %s23, 1
        %s616 = smul.addr %s615, 8
        %s617 = scalar_lea.vmem %s7, %s616
        // Predicated region
        $region65: #{tpu_custom_call.1} parent=47 // pred_check
          %p618 = pneg %p193
        $region66: #{tpu_custom_call.1} parent=47 // pred_check_branch
          %620 = sbr.rel (%p618) target = $region68
        $region67: #{tpu_custom_call.1} parent=47 // pred_region
          _
        $region68: #{tpu_custom_call.1} parent=47 // pred_fallthru
          _
      $region48: #{tpu_custom_call.1} parent=5 // pred_fallthru
        _
      %p621 = scmp.le.s32.totalorder 2, %s18
      // Predicated region
      $region69: #{tpu_custom_call.1} parent=5 // pred_check
        %p622 = pneg %p621
      $region70: #{tpu_custom_call.1} parent=5 // pred_check_branch
        %624 = sbr.rel (%p622) target = $region72
      $region71: #{tpu_custom_call.1} parent=5 // pred_region
        %s625 = ssub.s32 %s18, 2
        // Predicated region
        $region73: #{tpu_custom_call.1} parent=71 // pred_check
          %p626 = pneg %p199
        $region74: #{tpu_custom_call.1} parent=71 // pred_check_branch
          %628 = sbr.rel (%p626) target = $region76
        $region75: #{tpu_custom_call.1} parent=71 // pred_region
          %p629 = scmp.lt.s32.totalorder %s24, 1
          %s630 = scalar_select %p629, %s24, 1
          %s631 = smul.addr %s630, 8
          %s632 = scalar_lea.vmem %s7, %s631
        $region76: #{tpu_custom_call.1} parent=71 // pred_fallthru
          _
      $region72: #{tpu_custom_call.1} parent=5 // pred_fallthru
        _
    $region6: #{tpu_custom_call.1} parent=1 // loop_footer
      %s22 = sadd.s32 1, %s18
    $region7: #{tpu_custom_call.1} parent=1 // loop_footer_branch
      %17 = sbr.rel target = $region3
    $region8: #{tpu_custom_call.1} parent=1 // loop_exit
      _
    %633 = vsyncpa [#allocation3], 1
    %s634 = scalar_lea.sflag [#allocation3], 1
    %635 = vsyncpa %s634, 1
    %636 = vsyncpa [#allocation5], 1
    %637 = vsyncpa [#allocation8], 1

</llo_original>
